<compile_context>
chip_gen: v5e
topology: v5e:2x2
jax: 0.10.0
libtpu: 0.0.40
codegen_flags: <defaults>
</compile_context>

<pallas_src>
import math
import functools

import jax
import jax.numpy as jnp
from jax.experimental import pallas as pl
from jax.experimental.pallas import tpu as pltpu


def _usv_kernel(x_ref, v_ref, ust_ref, b_ref, o_ref, t_ref):
    """o = (x @ V) @ US_T + bias for one (row-tile, out-tile) grid point.

    t_ref is a f32 VMEM scratch holding x @ V for the current row tile; it is
    computed only on the first out-tile (j == 0) and reused for the rest.
    """
    @pl.when(pl.program_id(1) == 0)
    def _():
        t_ref[...] = jnp.dot(x_ref[...], v_ref[...],
                             preferred_element_type=jnp.float32)

    # Cast the f32 intermediate back to the compute dtype (bf16 in production)
    # before the second MXU pass; accumulation stays f32.
    t = t_ref[...].astype(ust_ref.dtype)
    y = jnp.dot(t, ust_ref[...], preferred_element_type=jnp.float32)
    o_ref[...] = (y + b_ref[...]).astype(o_ref.dtype)


@functools.partial(jax.jit, static_argnames=("block_m", "block_n", "compute_dtype"))
def linear_usv_forward(x, U_hat, S_hat, V_hat, bias, *,
                       block_m=512, block_n=1024, compute_dtype=None):
    """x: [..., in]; U_hat: [out, r]; S_hat: [r, r]; V_hat: [in, r]; bias: [out]."""
    in_features = x.shape[-1]
    out_features, r = U_hat.shape
    out_dtype = x.dtype
    cdt = jnp.dtype(compute_dtype) if compute_dtype is not None else jnp.dtype(x.dtype)

    # --- fold S into U and pre-transpose (one tiny XLA matmul, outside kernel) ---
    US_T = (U_hat.astype(jnp.float32) @ S_hat.astype(jnp.float32)).T   # [r, out]

    # --- pad rank up to a multiple of 128 lanes (exact: padded with zeros) ---
    rp = -(-r // 128) * 128
    V = V_hat
    if rp != r:
        V = jnp.pad(V, ((0, 0), (0, rp - r)))
        US_T = jnp.pad(US_T, ((0, rp - r), (0, 0)))

    V = V.astype(cdt)
    US_T = US_T.astype(cdt)
    bias2d = bias.astype(jnp.float32).reshape(1, out_features)

    # --- flatten leading dims; pad rows to a multiple of the row tile ---
    lead = x.shape[:-1]
    x2d = x.reshape(-1, in_features).astype(cdt)
    M = x2d.shape[0]
    bm = min(block_m, M)
    Mp = -(-M // bm) * bm
    if Mp != M:
        x2d = jnp.pad(x2d, ((0, Mp - M), (0, 0)))

    # --- out_features tiling: only tile when it splits into lane-dense tiles ---
    if out_features > block_n and out_features % block_n == 0 and block_n % 128 == 0:
        bn = block_n
    else:
        bn = out_features

    grid = (Mp // bm, out_features // bn)

    # --- explicit VMEM budget (double-buffered tiles + resident weights + scratch) ---
    csz = cdt.itemsize
    osz = jnp.dtype(out_dtype).itemsize
    est = (2 * bm * in_features * csz      # x tile (double-buffered)
           + 2 * bm * bn * osz             # out tile (double-buffered)
           + 2 * in_features * rp * csz    # V  (grid-invariant; Mosaic may double-buffer)
           + 2 * rp * bn * csz             # US_T tile
           + 2 * bn * 4                    # bias tile
           + bm * rp * 4)                  # f32 scratch
    vmem_limit = int(min(max(2 * est, 16 * 2 ** 20), 60 * 2 ** 20))

    # Note: V / bias index maps are grid-invariant; single-buffering them
    # (pipeline_mode) would save a little VMEM but the default is kept for
    # portability across Mosaic versions.
    out2d = pl.pallas_call(
        _usv_kernel,
        out_shape=jax.ShapeDtypeStruct((Mp, out_features), out_dtype),
        grid_spec=pltpu.PrefetchScalarGridSpec(
            num_scalar_prefetch=0,
            grid=grid,
            in_specs=[
                pl.BlockSpec((bm, in_features), lambda i, j: (i, 0)),   # x rows
                pl.BlockSpec((in_features, rp), lambda i, j: (0, 0)),   # V (full)
                pl.BlockSpec((rp, bn), lambda i, j: (0, j)),            # US_T tile
                pl.BlockSpec((1, bn), lambda i, j: (0, j)),             # bias tile
            ],
            out_specs=pl.BlockSpec((bm, bn), lambda i, j: (i, j)),
            scratch_shapes=[pltpu.VMEM((bm, rp), jnp.float32)],
        ),
        compiler_params=pltpu.CompilerParams(
            dimension_semantics=("parallel", "arbitrary"),
            vmem_limit_bytes=vmem_limit,
        ),
    )(x2d, V, US_T, bias2d)

    if Mp != M:
        out2d = out2d[:M]
    return out2d.reshape(*lead, out_features)


def init_linear_usv_params(key, in_features, out_features, rank, dtype=jnp.float32):
    """Deterministic re-implementation of Linear_USV.__init__ (fixed=True path)."""
    k_w, k_b = jax.random.split(key)

    # kaiming_uniform_(weight, a=sqrt(5)) on weight of shape [out, in]
    fan_in = in_features
    gain = math.sqrt(2.0 / (1.0 + 5.0))
    bound_w = math.sqrt(3.0) * gain / math.sqrt(fan_in)
    weight = jax.random.uniform(
        k_w, (out_features, in_features), dtype=dtype,
        minval=-bound_w, maxval=bound_w)

    # bias ~ U(-1/sqrt(fan_in), 1/sqrt(fan_in))
    bound_b = 1.0 / math.sqrt(fan_in)
    bias = jax.random.uniform(
        k_b, (out_features,), dtype=dtype, minval=-bound_b, maxval=bound_b)

    # fixed=True: rank = min(rank, in, out)
    r = min(rank, in_features, out_features)

    # SVD factorization, matching the torch slicing conventions
    Usvd, Ssvd, Vh = jnp.linalg.svd(weight, full_matrices=False)
    U_hat = Usvd[:, :r]                       # [out, r]
    S_hat = jnp.diag(Ssvd[:r])                # [r, r]
    V_hat = Vh.T[:, :r]                       # [in, r]
    return U_hat, S_hat, V_hat, bias


if __name__ == "__main__":
    in_features = 32
    out_features = 32
    rank = 8
    batch, seq = 2, 8

    key = jax.random.PRNGKey(0)
    k_params, k_x = jax.random.split(key)

    U_hat, S_hat, V_hat, bias = init_linear_usv_params(
        k_params, in_features, out_features, rank)

    x = jax.random.normal(k_x, (batch, seq, in_features), dtype=jnp.float32)

    # pure-JAX reference of the torch forward semantics (three chained linears)
    ref = ((x @ V_hat) @ S_hat.T) @ U_hat.T + bias

    # f32 compute path (tight numeric check; only rounding-order differs from ref)
    out = linear_usv_forward(x, U_hat, S_hat, V_hat, bias)
    out = jax.block_until_ready(out)
    assert out.shape == (batch, seq, out_features)
    assert jnp.allclose(out, ref, atol=1e-4, rtol=1e-4), "f32 mismatch vs reference"

    # bf16 MXU path (recommended production config; f32 accumulation)
    out_bf16 = linear_usv_forward(x, U_hat, S_hat, V_hat, bias,
                                  compute_dtype=jnp.bfloat16)
    out_bf16 = jax.block_until_ready(out_bf16)
    assert jnp.allclose(out_bf16, ref, atol=1e-1, rtol=5e-2), "bf16 mismatch vs reference"

    print("KERNEL_OK")
</pallas_src>

<mosaic_0001>
module attributes {stable_mosaic.version = 11 : i64} {
  func.func @_usv_kernel(%arg0: i32, %arg1: i32, %arg2: memref<16x32xf32, #tpu.memory_space<vmem>>, %arg3: memref<32x128xf32, #tpu.memory_space<vmem>>, %arg4: memref<128x32xf32, #tpu.memory_space<vmem>>, %arg5: memref<1x32xf32, #tpu.memory_space<vmem>>, %arg6: memref<16x32xf32, #tpu.memory_space<vmem>>, %arg7: memref<16x128xf32, #tpu.memory_space<vmem>>) attributes {dimension_semantics = [#tpu.dimension_semantics<parallel>, #tpu.dimension_semantics<arbitrary>], iteration_bounds = array<i64: 1, 1>, scalar_prefetch = 0 : i64, scratch_operands = 1 : i64, tpu.core_type = #tpu.core_type<tc>, window_params = [{transform_indices = @transform_0, window_bounds = array<i64: 16, 32>}, {pipeline_mode = #tpu.pipeline_mode<synchronous>, transform_indices = @transform_1, window_bounds = array<i64: 32, 128>}, {transform_indices = @transform_2, window_bounds = array<i64: 128, 32>}, {transform_indices = @transform_3, window_bounds = array<i64: 1, 32>}, {transform_indices = @transform_4, window_bounds = array<i64: 16, 32>}]} {
    %c0_i32 = arith.constant 0 : i32
    %0 = arith.cmpi eq, %arg1, %c0_i32 : i32
    %1 = arith.extui %0 : i1 to i32
    %c0_i32_0 = arith.constant 0 : i32
    %2 = arith.cmpi ne, %1, %c0_i32_0 : i32
    scf.if %2 {
      %c0_8 = arith.constant 0 : index
      %c0_9 = arith.constant 0 : index
      %10 = vector.load %arg2[%c0_8, %c0_9] : memref<16x32xf32, #tpu.memory_space<vmem>>, vector<16x32xf32>
      %c0_10 = arith.constant 0 : index
      %c0_11 = arith.constant 0 : index
      %11 = vector.load %arg3[%c0_10, %c0_11] : memref<32x128xf32, #tpu.memory_space<vmem>>, vector<32x128xf32>
      %cst_12 = arith.constant dense<0.000000e+00> : vector<16x128xf32>
      %12 = tpu.matmul %10, %11, %cst_12 {dimension_numbers = #tpu.dot_dimension_numbers<[1], [0], [0], [1], [0, 0, 1, 1], [], []>} : vector<16x32xf32>, vector<32x128xf32>, vector<16x128xf32> -> vector<16x128xf32>
      %c0_13 = arith.constant 0 : index
      %c0_14 = arith.constant 0 : index
      %13 = vector.load %arg7[%c0_13, %c0_14] : memref<16x128xf32, #tpu.memory_space<vmem>>, vector<16x128xf32>
      tpu.vector_store %arg7[%c0_13, %c0_14], %12 {strides = array<i32>} : memref<16x128xf32, #tpu.memory_space<vmem>>, vector<16x128xf32>,
    } else {
    }
    %c0 = arith.constant 0 : index
    %c0_1 = arith.constant 0 : index
    %3 = vector.load %arg7[%c0, %c0_1] : memref<16x128xf32, #tpu.memory_space<vmem>>, vector<16x128xf32>
    %c0_2 = arith.constant 0 : index
    %c0_3 = arith.constant 0 : index
    %4 = vector.load %arg4[%c0_2, %c0_3] : memref<128x32xf32, #tpu.memory_space<vmem>>, vector<128x32xf32>
    %cst = arith.constant dense<0.000000e+00> : vector<16x32xf32>
    %5 = tpu.matmul %3, %4, %cst {dimension_numbers = #tpu.dot_dimension_numbers<[1], [0], [0], [1], [0, 0, 1, 1], [], []>} : vector<16x128xf32>, vector<128x32xf32>, vector<16x32xf32> -> vector<16x32xf32>
    %c0_4 = arith.constant 0 : index
    %c0_5 = arith.constant 0 : index
    %6 = vector.load %arg5[%c0_4, %c0_5] : memref<1x32xf32, #tpu.memory_space<vmem>>, vector<1x32xf32>
    %7 = vector.broadcast %6 : vector<1x32xf32> to vector<16x32xf32>
    %8 = arith.addf %5, %7 : vector<16x32xf32>
    %c0_6 = arith.constant 0 : index
    %c0_7 = arith.constant 0 : index
    %9 = vector.load %arg6[%c0_6, %c0_7] : memref<16x32xf32, #tpu.memory_space<vmem>>, vector<16x32xf32>
    tpu.vector_store %arg6[%c0_6, %c0_7], %8 {strides = array<i32>} : memref<16x32xf32, #tpu.memory_space<vmem>>, vector<16x32xf32>,
    return
  }
  func.func @transform_0(%arg0: i32, %arg1: i32) -> (i32, i32) {
    %c0_i32 = arith.constant 0 : i32
    %c0_i32_0 = arith.constant 0 : i32
    return %arg0, %c0_i32 : i32, i32
  }
  func.func @transform_1(%arg0: i32, %arg1: i32) -> (i32, i32) {
    %c0_i32 = arith.constant 0 : i32
    %c0_i32_0 = arith.constant 0 : i32
    %c0_i32_1 = arith.constant 0 : i32
    return %c0_i32, %c0_i32_0 : i32, i32
  }
  func.func @transform_2(%arg0: i32, %arg1: i32) -> (i32, i32) {
    %c0_i32 = arith.constant 0 : i32
    %c0_i32_0 = arith.constant 0 : i32
    return %c0_i32, %arg1 : i32, i32
  }
  func.func @transform_3(%arg0: i32, %arg1: i32) -> (i32, i32) {
    %c0_i32 = arith.constant 0 : i32
    %c0_i32_0 = arith.constant 0 : i32
    return %c0_i32, %arg1 : i32, i32
  }
  func.func @transform_4(%arg0: i32, %arg1: i32) -> (i32, i32) {
    %c0_i32 = arith.constant 0 : i32
    return %arg0, %arg1 : i32, i32
  }
}

</mosaic_0001>

<llo_original>
// kernel: linear_usv_forward.1
$region0: #{linear_usv_forward.1}
  #allocation0 [shape = 'u32[]', space=smem, size = 0x4, offset = 0x4, fixed_abs, tag = 'smem constant byte address 0x4 - core index']
  #allocation1 [shape = 'u32[72,128]{1,0:T(1,128)}', space=vmem, size = 0x9000, scoped, tag = 'internal scratch']
  #allocation2 [shape = 'f32[16,128]{1,0:T(8,128)}', space=vmem, size = 0x2000, scoped, tag = 'scratch operand']
  %s0 = inlined_call_operand.vmem [shape: f32[16,32], index: 0, kind: input, shape index: {}]
  %s1 = inlined_call_operand.vmem [shape: f32[32,128], index: 1, kind: input, shape index: {}]
  %s2 = inlined_call_operand.vmem [shape: f32[128,32], index: 2, kind: input, shape index: {}]
  %s3 = inlined_call_operand.vmem [shape: f32[1,32], index: 3, kind: input, shape index: {}]
  %s4 = inlined_call_operand.hbm [shape: f32[16,32], index: 4, kind: output, shape index: {}]
  %s5 = sld [smem:[#allocation0]]
  $region30: #{linear_usv_forward.1} parent=0
    _
  %s7 = ssub.s32 1, %s5
  %s8 = scalar_select 0, %s7, %s5
  $region1: #{linear_usv_forward.1} parent=0
    #allocation3 [shape = 'u8[8192]{0}', space=vmem, size = 0x2000, scoped, tag = 'output window, operand 0, single buffered']
    #allocation4 [shape = 's32[1]{0}', space=sflag, size = 0x4, scoped, tag = 'scoped memory for linear_usv_forward.1']
    %9 = vsyncpa [#allocation4], 0
    // Predicated region
    $region2: #{linear_usv_forward.1} parent=1 // pred_check
      _
    $region3: #{linear_usv_forward.1} parent=1 // pred_check_branch
      %11 = sbr.rel (0) target = $region5
    $region4: #{linear_usv_forward.1} parent=1 // pred_region
      _
    $region5: #{linear_usv_forward.1} parent=1 // pred_fallthru
      _
    // Predicated region
    $region6: #{linear_usv_forward.1} parent=1 // pred_check
      _
    $region7: #{linear_usv_forward.1} parent=1 // pred_check_branch
      %13 = sbr.rel (0) target = $region9
    $region8: #{linear_usv_forward.1} parent=1 // pred_region
      _
    $region9: #{linear_usv_forward.1} parent=1 // pred_fallthru
      _
    // Predicated region
    $region10: #{linear_usv_forward.1} parent=1 // pred_check
      _
    $region11: #{linear_usv_forward.1} parent=1 // pred_check_branch
      %15 = sbr.rel (0) target = $region13
    $region12: #{linear_usv_forward.1} parent=1 // pred_region
      _
    $region13: #{linear_usv_forward.1} parent=1 // pred_fallthru
      _
    // Predicated region
    $region14: #{linear_usv_forward.1} parent=1 // pred_check
      _
    $region15: #{linear_usv_forward.1} parent=1 // pred_check_branch
      %17 = sbr.rel (0) target = $region17
    $region16: #{linear_usv_forward.1} parent=1 // pred_region
      _
    $region17: #{linear_usv_forward.1} parent=1 // pred_fallthru
      _
    %p18 = scmp.eq.s32.totalorder 0, 0
    // Predicated region
    $region18: #{linear_usv_forward.1} parent=1 // pred_check
      %p19 = pneg %p18
    $region19: #{linear_usv_forward.1} parent=1 // pred_check_branch
      %21 = sbr.rel (%p19) target = $region21
    $region20: #{linear_usv_forward.1} parent=1 // pred_region
      %v22 = vld [vmem:[%s0] sm:$0xff]
      %v23 = vld [vmem:[%s0 + $0x8] sm:$0xff]
      %v24 = vld [vmem:[%s1] sm:$0xff]
      %v25 = vld [vmem:[%s1 + $0x8] sm:$0xff]
      %v26 = vld [vmem:[%s1 + $0x10] sm:$0xff]
      %v27 = vld [vmem:[%s1 + $0x18] sm:$0xff]
      %vm28 = vcmask 261120
      %v30 = vsel %vm28, %v22, 0
      %v33 = vsel %vm28, %v23, 0
      %35 = vmatpush.msra.mxu0 0.0
      %36 = vmatpush.msra.mxu0 0.0
      %37 = vmatpush.msra.mxu0 0.0
      %38 = vmatpush.msra.mxu0 0.0
      %39 = vmatpush.msra.mxu0 0.0
      %40 = vmatpush.msra.mxu0 0.0
      %41 = vmatpush.msra.mxu0 0.0
      %42 = vmatpush.msra.mxu0 0.0
      %43 = vmatpush.msra.mxu0 0.0
      %44 = vmatpush.msra.mxu0 0.0
      %45 = vmatpush.msra.mxu0 0.0
      %46 = vmatpush.msra.mxu0 0.0
      %47 = vmatpush.msra.mxu0 %v27
      %48 = vmatpush.msra.mxu0 %v26
      %49 = vmatpush.msra.mxu0 %v25
      %50 = vmatpush.msra.mxu0 %v24
      %51 = vmatmul.f32.gmra.mxu0 %v30
      %v52 = vpop.f32.mrf.mxu0
      %v53 = vadd.f32 0.0, %v52
      %54 = vmatmul.f32.gmra.mxu0 %v33
      %v55 = vpop.f32.mrf.mxu0
      %v56 = vadd.f32 0.0, %v55
      %57 = vdwg.mxu0
      %58 = vst [vmem:[#allocation2] sm:$0xff] %v53
      %59 = vst [vmem:[#allocation2 + $0x8] sm:$0xff] %v56
    $region21: #{linear_usv_forward.1} parent=1 // pred_fallthru
      _
    %v60 = vld [vmem:[#allocation2] sm:$0xff]
    %v61 = vld [vmem:[#allocation2 + $0x8] sm:$0xff]
    %v62 = vld [vmem:[%s2] sm:$0xff]
    %v63 = vld [vmem:[%s2 + $0x8] sm:$0xff]
    %v64 = vld [vmem:[%s2 + $0x10] sm:$0xff]
    %v65 = vld [vmem:[%s2 + $0x18] sm:$0xff]
    %v66 = vld [vmem:[%s2 + $0x20] sm:$0xff]
    %v67 = vld [vmem:[%s2 + $0x28] sm:$0xff]
    %v68 = vld [vmem:[%s2 + $0x30] sm:$0xff]
    %v69 = vld [vmem:[%s2 + $0x38] sm:$0xff]
    %v70 = vld [vmem:[%s2 + $0x40] sm:$0xff]
    %v71 = vld [vmem:[%s2 + $0x48] sm:$0xff]
    %v72 = vld [vmem:[%s2 + $0x50] sm:$0xff]
    %v73 = vld [vmem:[%s2 + $0x58] sm:$0xff]
    %v74 = vld [vmem:[%s2 + $0x60] sm:$0xff]
    %v75 = vld [vmem:[%s2 + $0x68] sm:$0xff]
    %v76 = vld [vmem:[%s2 + $0x70] sm:$0xff]
    %v77 = vld [vmem:[%s2 + $0x78] sm:$0xff]
    %v78 = vld [vmem:[%s3] sm:$0x1]
    %v80 = vperm.slane %v78, 0
    %82 = vmatpush.msra.mxu0 %v77
    %83 = vmatpush.msra.mxu0 %v76
    %84 = vmatpush.msra.mxu0 %v75
    %85 = vmatpush.msra.mxu0 %v74
    %86 = vmatpush.msra.mxu0 %v73
    %87 = vmatpush.msra.mxu0 %v72
    %88 = vmatpush.msra.mxu0 %v71
    %89 = vmatpush.msra.mxu0 %v70
    %90 = vmatpush.msra.mxu0 %v69
    %91 = vmatpush.msra.mxu0 %v68
    %92 = vmatpush.msra.mxu0 %v67
    %93 = vmatpush.msra.mxu0 %v66
    %94 = vmatpush.msra.mxu0 %v65
    %95 = vmatpush.msra.mxu0 %v64
    %96 = vmatpush.msra.mxu0 %v63
    %97 = vmatpush.msra.mxu0 %v62
    %98 = vmatmul.f32.gmra.mxu0 %v60
    %v99 = vpop.f32.mrf.mxu0
    %v100 = vadd.f32 %v80, %v99
    %101 = vmatmul.f32.gmra.mxu0 %v61
    %v102 = vpop.f32.mrf.mxu0
    %v103 = vadd.f32 %v80, %v102
    %104 = vdwg.mxu0
    %vm105 = vcmask 261120
    %106 = vst.msk [vmem:[#allocation3] sm:$0xff] %vm105, %v100
    %107 = vst.msk [vmem:[#allocation3 + $0x8] sm:$0xff] %vm105, %v103
    // Predicated region
    $region22: #{linear_usv_forward.1} parent=1 // pred_check
      _
    $region23: #{linear_usv_forward.1} parent=1 // pred_check_branch
      %109 = sbr.rel (0) target = $region25
    $region24: #{linear_usv_forward.1} parent=1 // pred_region
      %111 = vsyncadd [#allocation4], 0
      %s112 = sshll.u32 [#allocation3], 4
      %s113 = int_to_ptr.vmem [resolvable:$true] %s112
      %s114 = sshll.u32 %s4, 4
      %s115 = int_to_ptr.hbm [resolvable:$true] %s114
      %120 = dma.vmem_to_hbm [thread:$0]  %s113, 256, %s115, [#allocation4], 128, 128, 8
    $region25: #{linear_usv_forward.1} parent=1 // pred_fallthru
      _
    // Predicated region
    $region26: #{linear_usv_forward.1} parent=1 // pred_check
      _
    $region27: #{linear_usv_forward.1} parent=1 // pred_check_branch
      %122 = sbr.rel (0) target = $region29
    $region28: #{linear_usv_forward.1} parent=1 // pred_region
      %124 = dma.done [#allocation4], 256
    $region29: #{linear_usv_forward.1} parent=1 // pred_fallthru
      _
    %125 = vsyncpa [#allocation4], 1

</llo_original>
